<compile_context>
chip_gen: v5e
topology: v5e:2x2
jax: 0.10.0
libtpu: 0.0.40
codegen_flags: <defaults>
</compile_context>

<pallas_src>
import functools

import jax
import jax.numpy as jnp
from jax import lax
from jax.experimental import pallas as pl
from jax.experimental.pallas import tpu as pltpu


def _dice_sums_kernel(score_ref, label_ref, out_ref, *,
                      apply_softmax, hw, tr, has_tail):
    """Accumulate per-class (intersect, z_sum, y_sum) lane-wise partial sums.

    score_ref : (C, tr, 128) native-dtype scores for image n, row-tile k
    label_ref : (1, tr, 128) integer labels (native narrow dtype)
    out_ref   : (3, C, 128) f32 resident per-image lane-wise accumulators
    """
    k = pl.program_id(1)

    @pl.when(k == 0)
    def _():
        out_ref[...] = jnp.zeros_like(out_ref)

    score = score_ref[...].astype(jnp.float32)          # (C, tr, 128)
    labels = label_ref[...].astype(jnp.int32)           # (1, tr, 128)

    if has_tail:                                        # trace-time constant
        row = k * tr + lax.broadcasted_iota(jnp.int32, (1, tr, 128), 1)
        lane = lax.broadcasted_iota(jnp.int32, (1, tr, 128), 2)
        valid = (row * 128 + lane) < hw                 # (1, tr, 128) bool
        labels = jnp.where(valid, labels, -1)           # never matches a class
        score = jnp.where(valid, score, 0.0)            # mask BEFORE exp

    if apply_softmax:
        # Class axis is the leading dim -> slab-wise elementwise VPU ops.
        m = jnp.max(score, axis=0, keepdims=True)       # (1, tr, 128)
        e = jnp.exp(score - m)
        inv = 1.0 / jnp.sum(e, axis=0, keepdims=True)   # exact, one per pixel
        score = e * inv
        if has_tail:
            score = jnp.where(valid, score, 0.0)

    class_ids = lax.broadcasted_iota(jnp.int32, score.shape, 0)
    eq = labels == class_ids                            # (C, tr, 128) bool

    out_ref[0] += jnp.sum(jnp.where(eq, score, 0.0), axis=1)   # intersect
    out_ref[1] += jnp.sum(score * score, axis=1)                # z_sum
    out_ref[2] += jnp.sum(jnp.where(eq, 1.0, 0.0), axis=1)      # y_sum (t^2==t)


def _pick_tile_rows(r, c, f32_block_budget=2 * 1024 * 1024):
    """Row-of-128-lanes tile along the pixel axis.

    Budget is on the in-kernel f32 working copy of one (C, tr, 128) score
    block; streamed native blocks + f32 temporaries are a small multiple of
    this, so ~2 MiB keeps total VMEM well under the 32 MiB scoped default on
    every generation (including v7x's 64 MiB physical VMEM).
    """
    tr_max = max(int(f32_block_budget // (c * 128 * 4)), 32)
    if r <= tr_max:
        return r                      # single full-extent block: no tail path
    tr_max = (tr_max // 32) * 32      # 32 rows tiles cleanly for 8/16/32-bit
    # Prefer a divisor of r (no overhang -> no per-step tail mask) as long as
    # it doesn't shrink the block below half the budget.
    lo = max(tr_max // 2, 32)
    for cand in range(tr_max, lo - 1, -32):
        if r % cand == 0:
            return cand
    return tr_max


def dice_loss(inputs, target, n_classes, weight=None, softmax=False,
              tile_rows=None):
    """Pallas implementation of DiceLoss.forward.

    inputs: (N, C, H, W) float scores (any float dtype; streamed natively)
    target: (N, H, W) integer class labels (any int dtype; streamed natively)
    """
    N, C, H, W = inputs.shape
    assert C == n_classes
    HW = H * W

    # Free reshapes of contiguous NCHW / NHW tensors — no transpose.
    score = inputs.reshape(N, C, HW)
    labels = target.reshape(N, 1, HW)
    if not jnp.issubdtype(labels.dtype, jnp.integer):
        labels = labels.astype(jnp.int32)

    # Lane-dense layout: pixels -> (rows, 128 lanes). Pad only for ragged HW.
    hw_pad = pl.cdiv(HW, 128) * 128
    if hw_pad != HW:
        score = jnp.pad(score, ((0, 0), (0, 0), (0, hw_pad - HW)))
        labels = jnp.pad(labels, ((0, 0), (0, 0), (0, hw_pad - HW)))
    R = hw_pad // 128
    score = score.reshape(N, C, R, 128)
    labels = labels.reshape(N, 1, R, 128)

    if tile_rows is None:
        tile_rows = _pick_tile_rows(R, C)
    tr = int(min(tile_rows, R))
    K = pl.cdiv(R, tr)
    has_tail = (hw_pad != HW) or (R % tr != 0)

    kernel = functools.partial(_dice_sums_kernel, apply_softmax=bool(softmax),
                               hw=HW, tr=tr, has_tail=has_tail)

    # (N, 3, C, 128) lane-wise partial sums; batch axis "parallel" (megacore
    # sharding on v7x, no-op on single-TC v5e/v6e), pixel-tile axis reduction.
    sums = pl.pallas_call(
        kernel,
        out_shape=jax.ShapeDtypeStruct((N, 3, C, 128), jnp.float32),
        grid_spec=pltpu.PrefetchScalarGridSpec(
            num_scalar_prefetch=0,
            grid=(N, K),
            in_specs=[
                pl.BlockSpec((pl.Squeezed(), C, tr, 128),
                             lambda n, k: (n, 0, k, 0)),
                pl.BlockSpec((pl.Squeezed(), 1, tr, 128),
                             lambda n, k: (n, 0, k, 0)),
            ],
            out_specs=pl.BlockSpec((pl.Squeezed(), 3, C, 128),
                                   lambda n, k: (n, 0, 0, 0)),
        ),
        compiler_params=pltpu.CompilerParams(
            dimension_semantics=("parallel", "arbitrary"),
            vmem_limit_bytes=32 * 1024 * 1024,
        ),
    )(score, labels)

    totals = jnp.sum(sums, axis=(0, 3))                 # (3, C)
    intersect, z_sum, y_sum = totals[0], totals[1], totals[2]

    smooth = 1e-5
    # _dice_loss returns 1 - dice_coeff per class; forward sums weight*that / C.
    per_class = 1.0 - (2.0 * intersect + smooth) / (z_sum + y_sum + smooth)

    if weight is None:
        w = jnp.ones((n_classes,), jnp.float32)
    else:
        w = jnp.asarray(weight, jnp.float32)
    return jnp.sum(per_class * w) / n_classes


def _dice_loss_ref(inputs, target, n_classes, weight=None, softmax=False):
    """Pure-JAX reference mirroring the PyTorch module."""
    inputs = inputs.astype(jnp.float32)
    if softmax:
        inputs = jax.nn.softmax(inputs, axis=1)
    onehot = (target[:, None].astype(jnp.int32)
              == jnp.arange(n_classes, dtype=jnp.int32)[None, :, None, None]
              ).astype(jnp.float32)
    if weight is None:
        weight = [1.0] * n_classes
    smooth = 1e-5
    loss = 0.0
    for i in range(n_classes):
        s, t = inputs[:, i], onehot[:, i]
        intersect = jnp.sum(s * t)
        y_sum = jnp.sum(t * t)
        z_sum = jnp.sum(s * s)
        loss += (1.0 - (2.0 * intersect + smooth) / (z_sum + y_sum + smooth)) * weight[i]
    return loss / n_classes


if __name__ == "__main__":
    key = jax.random.PRNGKey(0)
    ks = jax.random.split(key, 6)

    # --- Test 1: N=2, C=4, 16x16 (HW=256 -> R=2, single block per image) ---
    N, C, H, W = 2, 4, 16, 16
    x = jax.random.normal(ks[0], (N, C, H, W), dtype=jnp.float32)
    t = jax.random.randint(ks[1], (N, H, W), 0, C, dtype=jnp.int32)

    got = jax.block_until_ready(dice_loss(x, t, C, softmax=True))
    want = _dice_loss_ref(x, t, C, softmax=True)
    assert jnp.allclose(got, want, atol=1e-4, rtol=1e-4), (got, want)

    got = jax.block_until_ready(dice_loss(x, t, C, softmax=False))
    want = _dice_loss_ref(x, t, C, softmax=False)
    assert jnp.allclose(got, want, atol=1e-5, rtol=1e-5), (got, want)

    # --- Test 2: narrow uint8 labels streamed natively + class weights ---
    t_u8 = t.astype(jnp.uint8)
    wts4 = [0.5, 1.0, 2.0, 1.5]
    got = jax.block_until_ready(dice_loss(x, t_u8, C, weight=wts4, softmax=True))
    want = _dice_loss_ref(x, t, C, weight=wts4, softmax=True)
    assert jnp.allclose(got, want, atol=1e-4, rtol=1e-4), (got, want)

    # --- Test 3: ragged HW (16x18 = 288 -> padded to 384) -> tail mask path ---
    N3, C3, H3, W3 = 2, 3, 16, 18
    x3 = jax.random.normal(ks[2], (N3, C3, H3, W3), dtype=jnp.float32)
    t3 = jax.random.randint(ks[3], (N3, H3, W3), 0, C3, dtype=jnp.int32)
    wts3 = [0.5, 1.0, 2.0]
    got = jax.block_until_ready(dice_loss(x3, t3, C3, weight=wts3, softmax=True))
    want = _dice_loss_ref(x3, t3, C3, weight=wts3, softmax=True)
    assert jnp.allclose(got, want, atol=1e-4, rtol=1e-4), (got, want)

    # --- Test 4: multi-step accumulation (64x64 -> R=32, tile_rows=8 -> K=4) ---
    N4, C4, H4, W4 = 2, 4, 64, 64
    x4 = jax.random.normal(ks[4], (N4, C4, H4, W4), dtype=jnp.float32)
    t4 = jax.random.randint(ks[5], (N4, H4, W4), 0, C4, dtype=jnp.int32)
    got = jax.block_until_ready(dice_loss(x4, t4, C4, softmax=False, tile_rows=8))
    want = _dice_loss_ref(x4, t4, C4, softmax=False)
    assert jnp.allclose(got, want, atol=1e-5, rtol=1e-5), (got, want)

    # --- Test 5: bf16 scores streamed natively, cast to f32 only in-kernel ---
    x_bf = x.astype(jnp.bfloat16)
    got = jax.block_until_ready(dice_loss(x_bf, t, C, softmax=True))
    want = _dice_loss_ref(x_bf, t, C, softmax=True)
    assert jnp.allclose(got, want, atol=1e-3, rtol=1e-3), (got, want)

    print("KERNEL_OK")
</pallas_src>

<mosaic_0001>
module attributes {stable_mosaic.version = 11 : i64} {
  func.func @_dice_sums_kernel(%arg0: i32, %arg1: i32, %arg2: memref<1x4x2x128xf32, #tpu.memory_space<vmem>>, %arg3: memref<1x1x2x128xi32, #tpu.memory_space<vmem>>, %arg4: memref<1x3x4x128xf32, #tpu.memory_space<vmem>>) attributes {dimension_semantics = [#tpu.dimension_semantics<parallel>, #tpu.dimension_semantics<arbitrary>], iteration_bounds = array<i64: 2, 1>, scalar_prefetch = 0 : i64, scratch_operands = 0 : i64, tpu.core_type = #tpu.core_type<tc>, window_params = [{transform_indices = @transform_0, window_bounds = array<i64: 1, 4, 2, 128>}, {transform_indices = @transform_1, window_bounds = array<i64: 1, 1, 2, 128>}, {transform_indices = @transform_2, window_bounds = array<i64: 1, 3, 4, 128>}]} {
    %c0_i32 = arith.constant 0 : i32
    %0 = arith.cmpi eq, %arg1, %c0_i32 : i32
    %1 = arith.extui %0 : i1 to i32
    %c0_i32_0 = arith.constant 0 : i32
    %2 = arith.cmpi ne, %1, %c0_i32_0 : i32
    scf.if %2 {
      %cst_38 = arith.constant 0.000000e+00 : f32
      %48 = vector.broadcast %cst_38 : f32 to vector<3x4x128xf32>
      %c0_39 = arith.constant 0 : index
      %c0_40 = arith.constant 0 : index
      %c0_41 = arith.constant 0 : index
      %c0_42 = arith.constant 0 : index
      %49 = vector.load %arg4[%c0_39, %c0_40, %c0_41, %c0_42] : memref<1x3x4x128xf32, #tpu.memory_space<vmem>>, vector<1x3x4x128xf32>
      %50 = vector.shape_cast %49 : vector<1x3x4x128xf32> to vector<3x4x128xf32>
      %51 = vector.shape_cast %48 : vector<3x4x128xf32> to vector<1x3x4x128xf32>
      tpu.vector_store %arg4[%c0_39, %c0_40, %c0_41, %c0_42], %51 {strides = array<i32>} : memref<1x3x4x128xf32, #tpu.memory_space<vmem>>, vector<1x3x4x128xf32>,
    } else {
    }
    %c0 = arith.constant 0 : index
    %c0_1 = arith.constant 0 : index
    %c0_2 = arith.constant 0 : index
    %c0_3 = arith.constant 0 : index
    %3 = vector.load %arg2[%c0, %c0_1, %c0_2, %c0_3] : memref<1x4x2x128xf32, #tpu.memory_space<vmem>>, vector<1x4x2x128xf32>
    %4 = vector.shape_cast %3 : vector<1x4x2x128xf32> to vector<4x2x128xf32>
    %c0_4 = arith.constant 0 : index
    %c0_5 = arith.constant 0 : index
    %c0_6 = arith.constant 0 : index
    %c0_7 = arith.constant 0 : index
    %5 = vector.load %arg3[%c0_4, %c0_5, %c0_6, %c0_7] : memref<1x1x2x128xi32, #tpu.memory_space<vmem>>, vector<1x1x2x128xi32>
    %6 = vector.shape_cast %5 : vector<1x1x2x128xi32> to vector<1x2x128xi32>
    %cst = arith.constant dense<0xFF800000> : vector<2x128xf32>
    %7 = vector.multi_reduction <maximumf>, %4, %cst [0] : vector<4x2x128xf32> to vector<2x128xf32>
    %8 = vector.shape_cast %7 : vector<2x128xf32> to vector<1x2x128xf32>
    %9 = vector.broadcast %8 : vector<1x2x128xf32> to vector<4x2x128xf32>
    %10 = arith.subf %4, %9 : vector<4x2x128xf32>
    %11 = math.exp %10 : vector<4x2x128xf32>
    %cst_8 = arith.constant dense<0.000000e+00> : vector<2x128xf32>
    %12 = vector.multi_reduction <add>, %11, %cst_8 [0] : vector<4x2x128xf32> to vector<2x128xf32>
    %13 = vector.shape_cast %12 : vector<2x128xf32> to vector<1x2x128xf32>
    %cst_9 = arith.constant 1.000000e+00 : f32
    %14 = vector.broadcast %cst_9 : f32 to vector<1x2x128xf32>
    %15 = arith.divf %14, %13 : vector<1x2x128xf32>
    %16 = vector.broadcast %15 : vector<1x2x128xf32> to vector<4x2x128xf32>
    %17 = arith.mulf %11, %16 : vector<4x2x128xf32>
    %18 = tpu.iota {dimensions = array<i32: 0>} : vector<4x2x128xi32>
    %19 = vector.broadcast %6 : vector<1x2x128xi32> to vector<4x2x128xi32>
    %20 = arith.cmpi eq, %19, %18 : vector<4x2x128xi32>
    %c0_10 = arith.constant 0 : index
    %c0_11 = arith.constant 0 : index
    %c0_12 = arith.constant 0 : index
    %c0_13 = arith.constant 0 : index
    %21 = vector.load %arg4[%c0_10, %c0_11, %c0_12, %c0_13] : memref<1x3x4x128xf32, #tpu.memory_space<vmem>>, vector<1x1x4x128xf32>
    %22 = vector.shape_cast %21 : vector<1x1x4x128xf32> to vector<4x128xf32>
    %cst_14 = arith.constant 0.000000e+00 : f32
    %23 = vector.broadcast %cst_14 : f32 to vector<4x2x128xf32>
    %24 = arith.select %20, %17, %23 : vector<4x2x128xi1>, vector<4x2x128xf32>
    %cst_15 = arith.constant dense<0.000000e+00> : vector<4x128xf32>
    %25 = vector.multi_reduction <add>, %24, %cst_15 [1] : vector<4x2x128xf32> to vector<4x128xf32>
    %26 = arith.addf %22, %25 : vector<4x128xf32>
    %c0_16 = arith.constant 0 : index
    %c0_17 = arith.constant 0 : index
    %c0_18 = arith.constant 0 : index
    %c0_19 = arith.constant 0 : index
    %27 = vector.load %arg4[%c0_16, %c0_17, %c0_18, %c0_19] : memref<1x3x4x128xf32, #tpu.memory_space<vmem>>, vector<1x1x4x128xf32>
    %28 = vector.shape_cast %27 : vector<1x1x4x128xf32> to vector<4x128xf32>
    %29 = vector.shape_cast %26 : vector<4x128xf32> to vector<1x1x4x128xf32>
    tpu.vector_store %arg4[%c0_16, %c0_17, %c0_18, %c0_19], %29 {strides = array<i32>} : memref<1x3x4x128xf32, #tpu.memory_space<vmem>>, vector<1x1x4x128xf32>,
    %c0_20 = arith.constant 0 : index
    %c1 = arith.constant 1 : index
    %c0_21 = arith.constant 0 : index
    %c0_22 = arith.constant 0 : index
    %30 = vector.load %arg4[%c0_20, %c1, %c0_21, %c0_22] : memref<1x3x4x128xf32, #tpu.memory_space<vmem>>, vector<1x1x4x128xf32>
    %31 = vector.shape_cast %30 : vector<1x1x4x128xf32> to vector<4x128xf32>
    %32 = arith.mulf %17, %17 : vector<4x2x128xf32>
    %cst_23 = arith.constant dense<0.000000e+00> : vector<4x128xf32>
    %33 = vector.multi_reduction <add>, %32, %cst_23 [1] : vector<4x2x128xf32> to vector<4x128xf32>
    %34 = arith.addf %31, %33 : vector<4x128xf32>
    %c0_24 = arith.constant 0 : index
    %c1_25 = arith.constant 1 : index
    %c0_26 = arith.constant 0 : index
    %c0_27 = arith.constant 0 : index
    %35 = vector.load %arg4[%c0_24, %c1_25, %c0_26, %c0_27] : memref<1x3x4x128xf32, #tpu.memory_space<vmem>>, vector<1x1x4x128xf32>
    %36 = vector.shape_cast %35 : vector<1x1x4x128xf32> to vector<4x128xf32>
    %37 = vector.shape_cast %34 : vector<4x128xf32> to vector<1x1x4x128xf32>
    tpu.vector_store %arg4[%c0_24, %c1_25, %c0_26, %c0_27], %37 {strides = array<i32>} : memref<1x3x4x128xf32, #tpu.memory_space<vmem>>, vector<1x1x4x128xf32>,
    %c0_28 = arith.constant 0 : index
    %c2 = arith.constant 2 : index
    %c0_29 = arith.constant 0 : index
    %c0_30 = arith.constant 0 : index
    %38 = vector.load %arg4[%c0_28, %c2, %c0_29, %c0_30] : memref<1x3x4x128xf32, #tpu.memory_space<vmem>>, vector<1x1x4x128xf32>
    %39 = vector.shape_cast %38 : vector<1x1x4x128xf32> to vector<4x128xf32>
    %cst_31 = arith.constant 1.000000e+00 : f32
    %cst_32 = arith.constant 0.000000e+00 : f32
    %40 = vector.broadcast %cst_31 : f32 to vector<4x2x128xf32>
    %41 = vector.broadcast %cst_32 : f32 to vector<4x2x128xf32>
    %42 = arith.select %20, %40, %41 : vector<4x2x128xi1>, vector<4x2x128xf32>
    %cst_33 = arith.constant dense<0.000000e+00> : vector<4x128xf32>
    %43 = vector.multi_reduction <add>, %42, %cst_33 [1] : vector<4x2x128xf32> to vector<4x128xf32>
    %44 = arith.addf %39, %43 : vector<4x128xf32>
    %c0_34 = arith.constant 0 : index
    %c2_35 = arith.constant 2 : index
    %c0_36 = arith.constant 0 : index
    %c0_37 = arith.constant 0 : index
    %45 = vector.load %arg4[%c0_34, %c2_35, %c0_36, %c0_37] : memref<1x3x4x128xf32, #tpu.memory_space<vmem>>, vector<1x1x4x128xf32>
    %46 = vector.shape_cast %45 : vector<1x1x4x128xf32> to vector<4x128xf32>
    %47 = vector.shape_cast %44 : vector<4x128xf32> to vector<1x1x4x128xf32>
    tpu.vector_store %arg4[%c0_34, %c2_35, %c0_36, %c0_37], %47 {strides = array<i32>} : memref<1x3x4x128xf32, #tpu.memory_space<vmem>>, vector<1x1x4x128xf32>,
    return
  }
  func.func @transform_0(%arg0: i32, %arg1: i32) -> (i32, i32, i32, i32) {
    %c0_i32 = arith.constant 0 : i32
    %c0_i32_0 = arith.constant 0 : i32
    %c0_i32_1 = arith.constant 0 : i32
    return %arg0, %c0_i32, %arg1, %c0_i32_0 : i32, i32, i32, i32
  }
  func.func @transform_1(%arg0: i32, %arg1: i32) -> (i32, i32, i32, i32) {
    %c0_i32 = arith.constant 0 : i32
    %c0_i32_0 = arith.constant 0 : i32
    %c0_i32_1 = arith.constant 0 : i32
    return %arg0, %c0_i32, %arg1, %c0_i32_0 : i32, i32, i32, i32
  }
  func.func @transform_2(%arg0: i32, %arg1: i32) -> (i32, i32, i32, i32) {
    %c0_i32 = arith.constant 0 : i32
    %c0_i32_0 = arith.constant 0 : i32
    %c0_i32_1 = arith.constant 0 : i32
    %c0_i32_2 = arith.constant 0 : i32
    return %arg0, %c0_i32, %c0_i32_0, %c0_i32_1 : i32, i32, i32, i32
  }
}

</mosaic_0001>

<llo_original>
// kernel: tpu_custom_call.1
$region0: #{tpu_custom_call.1}
  #allocation0 [shape = 'u32[]', space=smem, size = 0x4, offset = 0x4, fixed_abs, tag = 'smem constant byte address 0x4 - core index']
  #allocation1 [shape = 'u32[72,128]{1,0:T(1,128)}', space=vmem, size = 0x9000, scoped, tag = 'internal scratch']
  %s0 = inlined_call_operand.hbm [shape: f32[2,4,2,128], index: 0, kind: input, shape index: {}]
  %s1 = inlined_call_operand.hbm [shape: s32[2,1,2,128], index: 1, kind: input, shape index: {}]
  %s2 = inlined_call_operand.hbm [shape: f32[2,3,4,128], index: 2, kind: output, shape index: {}]
  %s3 = sld [smem:[#allocation0]]
  $region53: #{tpu_custom_call.1} parent=0
    _
  %s5 = ssub.s32 1, %s3
  %s6 = scalar_select 0, %s5, %s3
  $region1: #{tpu_custom_call.1} parent=0
    #allocation2 [shape = 'u8[8192]{0}', space=vmem, size = 0x2000, scoped, tag = 'input window, operand 0']
    #allocation3 [shape = 's32[2]{0}', space=sflag, size = 0x8, scoped, tag = 'scoped memory for tpu_custom_call.1']
    #allocation4 [shape = 's32[2]{0}', space=sflag, size = 0x8, scoped, tag = 'scoped memory for tpu_custom_call.1']
    #allocation5 [shape = 'u8[2048]{0}', space=vmem, size = 0x800, scoped, tag = 'input window, operand 1']
    #allocation6 [shape = 's32[2]{0}', space=sflag, size = 0x8, scoped, tag = 'scoped memory for tpu_custom_call.1']
    #allocation7 [shape = 'u8[12288]{0}', space=vmem, size = 0x3000, scoped, tag = 'output window, operand 0']
    %7 = vsyncpa [#allocation3], 0
    %s8 = scalar_lea.sflag [#allocation3], 1
    %9 = vsyncpa %s8, 0
    %10 = vsyncpa [#allocation6], 0
    %s11 = scalar_lea.sflag [#allocation6], 1
    %12 = vsyncpa %s11, 0
    %13 = vsyncpa [#allocation4], 0
    %s14 = scalar_lea.sflag [#allocation4], 1
    %15 = vsyncpa %s14, 0
    loop: start=0, step=1, limit=4
    $region2: #{tpu_custom_call.1} parent=1 // loop_pre_header
      _
    $region3: #{tpu_custom_call.1} parent=1 // loop_header
      %s17 = sphi 0, %s21
      %p18 = scmp.ge.s32.totalorder %s17, 4
      %s24 = sphi 0, %s36
      %s25 = sphi 0, %s32
      %s26 = sphi 0, %s24
      %s27 = sphi 0, %s25
      %s28 = sphi 0, %s26
      %s29 = sphi 0, %s27
      %s41 = sphi 0, %s43
      %s44 = sphi 0, %s41
      %s45 = sphi 0, %s44
      %s61 = sphi 0, %s45
      %s69 = sphi 0, %s71
      %s72 = sphi 0, %s69
      %s73 = sphi 0, %s72
      %s89 = sphi 0, %s73
      %s95 = sphi 0, %s97
      %s98 = sphi 0, %s95
      %s99 = sphi 0, %s98
      %s115 = sphi 0, %s99
    $region4: #{tpu_custom_call.1} parent=1 // loop_header_branch
      %20 = sbr.rel (%p18) target = $region8
    $region5: #{tpu_custom_call.1} parent=1 // loop_body
      %s22 = ssub.s32 %s17, 1
      %s23 = ssub.s32 %s17, 2
      %s30 = sadd.s32 1, %s25
      %p31 = scmp.ge.s32.totalorder %s30, 1
      %s32 = scalar_select %p31, 0, %s30
      %s33 = sadd.s32 1, %s24
      %s34 = scalar_select %p31, %s33, %s24
      %p35 = scmp.ge.s32.totalorder %s34, 2
      %s36 = scalar_select %p35, 0, %s34
      %s37 = ssub.s32 %s24, %s36
      %s38 = ssub.s32 %s25, %s32
      %s39 = sor.u32 %s37, %s38
      %p40 = scmp.eq.s32.totalorder %s39, 0
      %s42 = sadd.s32 %s41, 1
      %s43 = scalar_select %p40, %s41, %s42
      %p46 = pneg %p40
      %p47 = scmp.eq.s32.totalorder %s17, 1
      %p48 = por %p46, %p47
      %p49 = scmp.ne.s32.totalorder %s41, %s44
      %p50 = scmp.eq.s32.totalorder %s17, 0
      %p51 = por %p49, %p50
      %p52 = scmp.ne.s32.totalorder %s41, %s44
      %p53 = scmp.eq.s32.totalorder %s22, 1
      %p54 = por %p52, %p53
      %p55 = scmp.ne.s32.totalorder %s44, %s45
      %p56 = scmp.eq.s32.totalorder %s22, 0
      %p57 = por %p55, %p56
      %p58 = scmp.ne.s32.totalorder %s44, %s45
      %p59 = scmp.eq.s32.totalorder %s23, 1
      %p60 = por %p58, %p59
      %p62 = scmp.ne.s32.totalorder %s45, %s61
      %p63 = scmp.eq.s32.totalorder %s23, 0
      %p64 = por %p62, %p63
      %s65 = ssub.s32 %s24, %s36
      %s66 = ssub.s32 %s25, %s32
      %s67 = sor.u32 %s65, %s66
      %p68 = scmp.eq.s32.totalorder %s67, 0
      %s70 = sadd.s32 %s69, 1
      %s71 = scalar_select %p68, %s69, %s70
      %p74 = pneg %p68
      %p75 = scmp.eq.s32.totalorder %s17, 1
      %p76 = por %p74, %p75
      %p77 = scmp.ne.s32.totalorder %s69, %s72
      %p78 = scmp.eq.s32.totalorder %s17, 0
      %p79 = por %p77, %p78
      %p80 = scmp.ne.s32.totalorder %s69, %s72
      %p81 = scmp.eq.s32.totalorder %s22, 1
      %p82 = por %p80, %p81
      %p83 = scmp.ne.s32.totalorder %s72, %s73
      %p84 = scmp.eq.s32.totalorder %s22, 0
      %p85 = por %p83, %p84
      %p86 = scmp.ne.s32.totalorder %s72, %s73
      %p87 = scmp.eq.s32.totalorder %s23, 1
      %p88 = por %p86, %p87
      %p90 = scmp.ne.s32.totalorder %s73, %s89
      %p91 = scmp.eq.s32.totalorder %s23, 0
      %p92 = por %p90, %p91
      %s93 = ssub.s32 %s24, %s36
      %p94 = scmp.eq.s32.totalorder %s93, 0
      %s96 = sadd.s32 %s95, 1
      %s97 = scalar_select %p94, %s95, %s96
      %p100 = pneg %p94
      %p101 = scmp.eq.s32.totalorder %s17, 1
      %p102 = por %p100, %p101
      %p103 = scmp.ne.s32.totalorder %s95, %s98
      %p104 = scmp.eq.s32.totalorder %s17, 0
      %p105 = por %p103, %p104
      %p106 = scmp.ne.s32.totalorder %s95, %s98
      %p107 = scmp.eq.s32.totalorder %s22, 1
      %p108 = por %p106, %p107
      %p109 = scmp.ne.s32.totalorder %s98, %s99
      %p110 = scmp.eq.s32.totalorder %s22, 0
      %p111 = por %p109, %p110
      %p112 = scmp.ne.s32.totalorder %s98, %s99
      %p113 = scmp.eq.s32.totalorder %s23, 1
      %p114 = por %p112, %p113
      %p116 = scmp.ne.s32.totalorder %s99, %s115
      %p117 = scmp.eq.s32.totalorder %s23, 0
      %p118 = por %p116, %p117
      %p119 = scmp.le.s32.totalorder 1, %s17
      %p120 = scmp.lt.s32.totalorder %s17, 3
      %p121 = pnand %p119, %p120
      %p122 = pneg %p121
      // Predicated region
      $region9: #{tpu_custom_call.1} parent=5 // pred_check
        _
      $region10: #{tpu_custom_call.1} parent=5 // pred_check_branch
        %124 = sbr.rel (%p121) target = $region12
      $region11: #{tpu_custom_call.1} parent=5 // pred_region
        %s125 = ssub.s32 %s17, 1
      $region12: #{tpu_custom_call.1} parent=5 // pred_fallthru
        _
      %p126 = scmp.lt.s32.totalorder %s17, 2
      // Predicated region
      $region13: #{tpu_custom_call.1} parent=5 // pred_check
        %p127 = pneg %p126
      $region14: #{tpu_custom_call.1} parent=5 // pred_check_branch
        %129 = sbr.rel (%p127) target = $region16
      $region15: #{tpu_custom_call.1} parent=5 // pred_region
        // Predicated region
        $region17: #{tpu_custom_call.1} parent=15 // pred_check
          %p130 = pneg %p51
        $region18: #{tpu_custom_call.1} parent=15 // pred_check_branch
          %132 = sbr.rel (%p130) target = $region20
        $region19: #{tpu_custom_call.1} parent=15 // pred_region
          %s133 = sand.u32 %s41, 1
          %s134 = scalar_lea.sflag [#allocation3], %s133
          %s135 = sand.u32 %s41, 1
          %s136 = smul.addr %s135, 8
          %s137 = scalar_lea.vmem [#allocation2], %s136
          %139 = vsyncadd %s134, 0
          %s140 = smul.addr %s24, 4
          %s141 = sadd.s32 %s25, %s140
          %s142 = smul.addr %s141, 2
          %s143 = scalar_lea.hbm %s0, %s142
          %s144 = sshll.u32 %s143, 4
          %s145 = int_to_ptr.hbm [resolvable:$true] %s144
          %s146 = sshll.u32 %s137, 4
          %s147 = int_to_ptr.vmem [resolvable:$true] %s146
          %152 = dma.hbm_to_vmem [thread:$0]  %s145, 128, %s147, %s134, 32, 32, 2
        $region20: #{tpu_custom_call.1} parent=15 // pred_fallthru
          _
        // Predicated region
        $region21: #{tpu_custom_call.1} parent=15 // pred_check
          %p153 = pneg %p79
        $region22: #{tpu_custom_call.1} parent=15 // pred_check_branch
          %155 = sbr.rel (%p153) target = $region24
        $region23: #{tpu_custom_call.1} parent=15 // pred_region
          %s156 = sand.u32 %s69, 1
          %s157 = scalar_lea.sflag [#allocation6], %s156
          %s158 = sand.u32 %s69, 1
          %s159 = smul.addr %s158, 2
          %s160 = scalar_lea.vmem [#allocation5], %s159
          %162 = vsyncadd %s157, 0
          %s163 = sadd.s32 %s25, %s24
          %s164 = smul.addr %s163, 2
          %s165 = scalar_lea.hbm %s1, %s164
          %s167 = sshll.u32 %s165, 4
          %s168 = int_to_ptr.hbm [resolvable:$true] %s167
          %s169 = sshll.u32 %s160, 4
          %s170 = int_to_ptr.vmem [resolvable:$true] %s169
          %172 = dma.hbm_to_vmem [thread:$0]  %s168, 32, %s170, %s157
        $region24: #{tpu_custom_call.1} parent=15 // pred_fallthru
          _
      $region16: #{tpu_custom_call.1} parent=5 // pred_fallthru
        _
      %p173 = scmp.le.s32.totalorder 1, %s17
      %p174 = scmp.lt.s32.totalorder %s17, 3
      %p175 = pnand %p173, %p174
      %p176 = pneg %p175
      // Predicated region
      $region25: #{tpu_custom_call.1} parent=5 // pred_check
        _
      $region26: #{tpu_custom_call.1} parent=5 // pred_check_branch
        %178 = sbr.rel (%p175) target = $region28
      $region27: #{tpu_custom_call.1} parent=5 // pred_region
        %s179 = ssub.s32 %s17, 1
        %s180 = sand.u32 %s44, 1
        %s181 = scalar_lea.sflag [#allocation3], %s180
        %s182 = sand.u32 %s44, 1
        %s183 = smul.addr %s182, 8
        %s184 = scalar_lea.vmem [#allocation2], %s183
        // Predicated region
        $region29: #{tpu_custom_call.1} parent=27 // pred_check
          %p185 = pneg %p57
        $region30: #{tpu_custom_call.1} parent=27 // pred_check_branch
          %187 = sbr.rel (%p185) target = $region32
        $region31: #{tpu_custom_call.1} parent=27 // pred_region
          %189 = dma.done %s181, 128
        $region32: #{tpu_custom_call.1} parent=27 // pred_fallthru
          _
        %s190 = sand.u32 %s72, 1
        %s191 = scalar_lea.sflag [#allocation6], %s190
        %s192 = sand.u32 %s72, 1
        %s193 = smul.addr %s192, 2
        %s194 = scalar_lea.vmem [#allocation5], %s193
        // Predicated region
        $region33: #{tpu_custom_call.1} parent=27 // pred_check
          %p195 = pneg %p85
        $region34: #{tpu_custom_call.1} parent=27 // pred_check_branch
          %197 = sbr.rel (%p195) target = $region36
        $region35: #{tpu_custom_call.1} parent=27 // pred_region
          %199 = dma.done %s191, 32
        $region36: #{tpu_custom_call.1} parent=27 // pred_fallthru
          _
        %s200 = sand.u32 %s44, 1
        %s201 = scalar_lea.sflag [#allocation3], %s200
        %s202 = sand.u32 %s44, 1
        %s203 = smul.addr %s202, 8
        %s204 = scalar_lea.vmem [#allocation2], %s203
        %p205 = pneg %p57
        %p206 = pneg %p54
        %s207 = sand.u32 %s72, 1
        %s208 = scalar_lea.sflag [#allocation6], %s207
        %s209 = sand.u32 %s72, 1
        %s210 = smul.addr %s209, 2
        %s211 = scalar_lea.vmem [#allocation5], %s210
        %p212 = pneg %p85
        %p213 = pneg %p82
        %p214 = pneg %p111
        %p215 = pneg %p108
        %s216 = sand.u32 %s98, 1
        %s217 = scalar_lea.sflag [#allocation4], %s216
        %s218 = sand.u32 %s98, 1
        %s219 = smul.addr %s218, 12
        %s220 = scalar_lea.vmem [#allocation7], %s219
        %p221 = scmp.eq.s32.totalorder %s27, 0
        // Predicated region
        $region37: #{tpu_custom_call.1} parent=27 // pred_check
          %p222 = pneg %p221
        $region38: #{tpu_custom_call.1} parent=27 // pred_check_branch
          %224 = sbr.rel (%p222) target = $region40
        $region39: #{tpu_custom_call.1} parent=27 // pred_region
          %225 = vst [vmem:[%s220] sm:$0xf] 0.0
          %226 = vst [vmem:[%s220 + $0x4] sm:$0xf] 0.0
          %227 = vst [vmem:[%s220 + $0x8] sm:$0xf] 0.0
        $region40: #{tpu_custom_call.1} parent=27 // pred_fallthru
          _
        %v228 = vld [vmem:[%s184] sm:$0x3]
        %v229 = vld [vmem:[%s184 + $0x2] sm:$0x3]
        %v230 = vld [vmem:[%s184 + $0x4] sm:$0x3]
        %v231 = vld [vmem:[%s184 + $0x6] sm:$0x3]
        %v232 = vld [vmem:[%s194] sm:$0x3]
        %vm233 = vcmask 1041408
        %v234 = vsel %vm233, %v228, -inf
        %v235 = vsel %vm233, %v229, -inf
        %v236 = vsel %vm233, %v230, -inf
        %v237 = vsel %vm233, %v231, -inf
        %v238 = vmax.f32 %v234, %v235
        %v239 = vmax.f32 %v236, %v237
        %v240 = vmax.f32 %v238, %v239
        %v241 = vsub.f32 %v228, %v240
        %v242 = vsub.f32 %v229, %v240
        %v243 = vsub.f32 %v230, %v240
        %v244 = vsub.f32 %v231, %v240
        %v245 = vmul.f32 %v241, 1.442695
        %v246 = vpow.pop %v245
        %v247 = vmul.f32 %v242, 1.442695
        %v248 = vpow.pop %v247
        %v249 = vmul.f32 %v243, 1.442695
        %v250 = vpow.pop %v249
        %v251 = vmul.f32 %v244, 1.442695
        %v252 = vpow.pop %v251
        %v253 = vsel %vm233, %v246, 0.0
        %v254 = vsel %vm233, %v248, 0.0
        %v255 = vadd.f32 %v253, %v254
        %v256 = vsel %vm233, %v250, 0.0
        %v257 = vadd.f32 %v255, %v256
        %v258 = vsel %vm233, %v252, 0.0
        %v259 = vadd.f32 %v257, %v258
        %v260 = vrcp.pop %v259
        %v261 = vmul.f32 %v259, %v260
        %v262 = vsub.f32 1.0, %v261
        %v263 = vmul.f32 %v260, %v262
        %v264 = vadd.f32 %v260, %v263
        %vm265 = vweird.f32 %v259
        %vm266 = vweird.f32 %v260
        %vm267 = vmor %vm265, %vm266
        %v268 = vsel %vm267, %v260, %v264
        %v269 = vand.u32 2147483647, %v259
        %vm270 = vcmp.eq.f32.partialorder %v269, 8.507059e+37
        %v271 = vand.u32 %v259, 2147483648
        %v272 = vor.u32 1.1754944e-38, %v271
        %v273 = vsel %vm270, %v272, %v268
        %v274 = vmul.f32 1.0, %v273
        %v275 = vmul.f32 %v246, %v274
        %v276 = vmul.f32 %v248, %v274
        %v277 = vmul.f32 %v250, %v274
        %v278 = vmul.f32 %v252, %v274
        %vm279 = vcmp.eq.s32.totalorder %v232, 0
        %vm280 = vcmp.eq.s32.totalorder %v232, 1
        %vm281 = vcmp.eq.s32.totalorder %v232, 2
        %vm282 = vcmp.eq.s32.totalorder %v232, 3
        %v283 = vld [vmem:[%s220] sm:$0xf]
        %v284 = vsel %vm279, %v275, 0.0
        %v285 = vsel %vm280, %v276, 0.0
        %v286 = vsel %vm281, %v277, 0.0
        %v287 = vsel %vm282, %v278, 0.0
        %v288 = vsel %vm233, %v284, 0.0
        %v289 = vrot.slane %v288, 4
        %v290 = vadd.f32 %v288, %v289
        %v291 = vrot.slane %v290, 2
        %v292 = vadd.f32 %v290, %v291
        %v293 = vrot.slane %v292, 1
        %v294 = vadd.f32 %v292, %v293
        %v295 = vsel %vm233, %v285, 0.0
        %v296 = vrot.slane %v295, 4
        %v297 = vadd.f32 %v295, %v296
        %v298 = vrot.slane %v297, 2
        %v299 = vadd.f32 %v297, %v298
        %v300 = vrot.slane %v299, 1
        %v301 = vadd.f32 %v299, %v300
        %v302 = vsel %vm233, %v286, 0.0
        %v303 = vrot.slane %v302, 4
        %v304 = vadd.f32 %v302, %v303
        %v305 = vrot.slane %v304, 2
        %v306 = vadd.f32 %v304, %v305
        %v307 = vrot.slane %v306, 1
        %v308 = vadd.f32 %v306, %v307
        %v309 = vsel %vm233, %v287, 0.0
        %v310 = vrot.slane %v309, 4
        %v311 = vadd.f32 %v309, %v310
        %v312 = vrot.slane %v311, 2
        %v313 = vadd.f32 %v311, %v312
        %v314 = vrot.slane %v313, 1
        %v315 = vadd.f32 %v313, %v314
        %vm320 = vcmask 1041409
        %v321 = vsel %vm320, %v301, %v294
        %vm322 = vcmask 1042434
        %v323 = vsel %vm322, %v308, %v321
        %vm324 = vcmask 1043459
        %v325 = vsel %vm324, %v315, %v323
        %v327 = vadd.f32 %v283, %v325
        %328 = vst [vmem:[%s220] sm:$0xf] %v327
        %s329 = scalar_lea.vmem %s220, 4 [#allocation7]
        %v330 = vld [vmem:[%s329] sm:$0xf]
        %v331 = vmul.f32 %v275, %v275
        %v332 = vmul.f32 %v276, %v276
        %v333 = vmul.f32 %v277, %v277
        %v334 = vmul.f32 %v278, %v278
        %v335 = vsel %vm233, %v331, 0.0
        %v336 = vrot.slane %v335, 4
        %v337 = vadd.f32 %v335, %v336
        %v338 = vrot.slane %v337, 2
        %v339 = vadd.f32 %v337, %v338
        %v340 = vrot.slane %v339, 1
        %v341 = vadd.f32 %v339, %v340
        %v342 = vsel %vm233, %v332, 0.0
        %v343 = vrot.slane %v342, 4
        %v344 = vadd.f32 %v342, %v343
        %v345 = vrot.slane %v344, 2
        %v346 = vadd.f32 %v344, %v345
        %v347 = vrot.slane %v346, 1
        %v348 = vadd.f32 %v346, %v347
        %v349 = vsel %vm233, %v333, 0.0
        %v350 = vrot.slane %v349, 4
        %v351 = vadd.f32 %v349, %v350
        %v352 = vrot.slane %v351, 2
        %v353 = vadd.f32 %v351, %v352
        %v354 = vrot.slane %v353, 1
        %v355 = vadd.f32 %v353, %v354
        %v356 = vsel %vm233, %v334, 0.0
        %v357 = vrot.slane %v356, 4
        %v358 = vadd.f32 %v356, %v357
        %v359 = vrot.slane %v358, 2
        %v360 = vadd.f32 %v358, %v359
        %v361 = vrot.slane %v360, 1
        %v362 = vadd.f32 %v360, %v361
        %v367 = vsel %vm320, %v348, %v341
        %v368 = vsel %vm322, %v355, %v367
        %v369 = vsel %vm324, %v362, %v368
        %v371 = vadd.f32 %v330, %v369
        %372 = vst [vmem:[%s329] sm:$0xf] %v371
        %s373 = scalar_lea.vmem %s220, 8 [#allocation7]
        %v374 = vld [vmem:[%s373] sm:$0xf]
        %v375 = vsel %vm279, 1.0, 0.0
        %v376 = vsel %vm280, 1.0, 0.0
        %v377 = vsel %vm281, 1.0, 0.0
        %v378 = vsel %vm282, 1.0, 0.0
        %v379 = vsel %vm233, %v375, 0.0
        %v380 = vrot.slane %v379, 4
        %v381 = vadd.f32 %v379, %v380
        %v382 = vrot.slane %v381, 2
        %v383 = vadd.f32 %v381, %v382
        %v384 = vrot.slane %v383, 1
        %v385 = vadd.f32 %v383, %v384
        %v386 = vsel %vm233, %v376, 0.0
        %v387 = vrot.slane %v386, 4
        %v388 = vadd.f32 %v386, %v387
        %v389 = vrot.slane %v388, 2
        %v390 = vadd.f32 %v388, %v389
        %v391 = vrot.slane %v390, 1
        %v392 = vadd.f32 %v390, %v391
        %v393 = vsel %vm233, %v377, 0.0
        %v394 = vrot.slane %v393, 4
        %v395 = vadd.f32 %v393, %v394
        %v396 = vrot.slane %v395, 2
        %v397 = vadd.f32 %v395, %v396
        %v398 = vrot.slane %v397, 1
        %v399 = vadd.f32 %v397, %v398
        %v400 = vsel %vm233, %v378, 0.0
        %v401 = vrot.slane %v400, 4
        %v402 = vadd.f32 %v400, %v401
        %v403 = vrot.slane %v402, 2
        %v404 = vadd.f32 %v402, %v403
        %v405 = vrot.slane %v404, 1
        %v406 = vadd.f32 %v404, %v405
        %v411 = vsel %vm320, %v392, %v385
        %v412 = vsel %vm322, %v399, %v411
        %v413 = vsel %vm324, %v406, %v412
        %v415 = vadd.f32 %v374, %v413
        %416 = vst [vmem:[%s373] sm:$0xf] %v415
        %s417 = sand.u32 %s98, 1
        %s418 = scalar_lea.sflag [#allocation4], %s417
        %s419 = sand.u32 %s98, 1
        %s420 = smul.addr %s419, 12
        %s421 = scalar_lea.vmem [#allocation7], %s420
        // Predicated region
        $region41: #{tpu_custom_call.1} parent=27 // pred_check
          %p422 = pneg %p108
        $region42: #{tpu_custom_call.1} parent=27 // pred_check_branch
          %424 = sbr.rel (%p422) target = $region44
        $region43: #{tpu_custom_call.1} parent=27 // pred_region
          %426 = vsyncadd %s418, 0
          %s427 = smul.addr %s26, 3
          %s428 = smul.addr %s427, 4
          %s429 = scalar_lea.hbm %s2, %s428
          %s430 = sshll.u32 %s421, 4
          %s431 = int_to_ptr.vmem [resolvable:$true] %s430
          %s432 = sshll.u32 %s429, 4
          %s433 = int_to_ptr.hbm [resolvable:$true] %s432
          %438 = dma.vmem_to_hbm [thread:$0]  %s431, 192, %s433, %s418, 64, 64, 4
        $region44: #{tpu_custom_call.1} parent=27 // pred_fallthru
          _
      $region28: #{tpu_custom_call.1} parent=5 // pred_fallthru
        _
      %p439 = scmp.le.s32.totalorder 2, %s17
      // Predicated region
      $region45: #{tpu_custom_call.1} parent=5 // pred_check
        %p440 = pneg %p439
      $region46: #{tpu_custom_call.1} parent=5 // pred_check_branch
        %442 = sbr.rel (%p440) target = $region48
      $region47: #{tpu_custom_call.1} parent=5 // pred_region
        %s443 = ssub.s32 %s17, 2
        // Predicated region
        $region49: #{tpu_custom_call.1} parent=47 // pred_check
          %p444 = pneg %p114
        $region50: #{tpu_custom_call.1} parent=47 // pred_check_branch
          %446 = sbr.rel (%p444) target = $region52
        $region51: #{tpu_custom_call.1} parent=47 // pred_region
          %s447 = sand.u32 %s99, 1
          %s448 = scalar_lea.sflag [#allocation4], %s447
          %s449 = sand.u32 %s99, 1
          %s450 = smul.addr %s449, 12
          %s451 = scalar_lea.vmem [#allocation7], %s450
          %453 = dma.done %s448, 192
        $region52: #{tpu_custom_call.1} parent=47 // pred_fallthru
          _
      $region48: #{tpu_custom_call.1} parent=5 // pred_fallthru
        _
    $region6: #{tpu_custom_call.1} parent=1 // loop_footer
      %s21 = sadd.s32 1, %s17
    $region7: #{tpu_custom_call.1} parent=1 // loop_footer_branch
      %16 = sbr.rel target = $region3
    $region8: #{tpu_custom_call.1} parent=1 // loop_exit
      _
    %454 = vsyncpa [#allocation3], 1
    %s455 = scalar_lea.sflag [#allocation3], 1
    %456 = vsyncpa %s455, 1
    %457 = vsyncpa [#allocation6], 1
    %s458 = scalar_lea.sflag [#allocation6], 1
    %459 = vsyncpa %s458, 1
    %460 = vsyncpa [#allocation4], 1
    %s461 = scalar_lea.sflag [#allocation4], 1
    %462 = vsyncpa %s461, 1

</llo_original>
